<compile_context>
chip_gen: v6e
topology: v6e:2x2x1
jax: 0.10.0
libtpu: 0.0.40
codegen_flags: <defaults>
</compile_context>

<pallas_src>
import jax
import jax.numpy as jnp
from jax.experimental import pallas as pl
from jax.experimental.pallas import tpu as pltpu


# ----------------------------------------------------------------------------- kernel

def _mlp_softmax_kernel(x_ref, w2_ref, b2_ref, w3_ref, b3_ref, wo_ref, bo_ref, o_ref):
    x = x_ref[...].astype(jnp.float32)

    # layer_2 (+ folded BN2) + relu        (dropout == identity in eval)
    h = jnp.dot(x, w2_ref[...], preferred_element_type=jnp.float32) + b2_ref[...]
    h = jnp.maximum(h, 0.0)

    # layer_3 (+ folded BN3) + relu        (dropout == identity in eval)
    h = jnp.dot(h, w3_ref[...], preferred_element_type=jnp.float32) + b3_ref[...]
    h = jnp.maximum(h, 0.0)

    # layer_out + softmax over last dim (padded class columns carry -1e30 bias -> exp==0)
    logits = jnp.dot(h, wo_ref[...], preferred_element_type=jnp.float32) + bo_ref[...]
    m = jnp.max(logits, axis=-1, keepdims=True)
    e = jnp.exp(logits - m)
    denom = jnp.sum(e, axis=-1, keepdims=True)
    # exact reciprocal so softmax rows sum to 1 within 1e-5
    o_ref[...] = (e * pl.reciprocal(denom, approx=False)).astype(o_ref.dtype)


# ----------------------------------------------------------------------------- helpers

def _round_up(n: int, m: int) -> int:
    return ((n + m - 1) // m) * m


def _choose_batch_tile(B: int) -> int:
    """Largest useful batch tile (sublane-aligned), but >= 2 grid steps when B > 8
    so the 'parallel' batch axis can feed both TensorCores on v7x."""
    if B <= 8:
        return 8
    half = _round_up(pl.cdiv(B, 2), 8)     # guarantees >= 2 grid steps
    return min(1024, half)                 # 1024-row cap: ~3 MiB/step, fits all generations


def prepare_params(params, eps: float = 1e-5):
    """One-time (outside the hot path): fold BN into W/b and pad dims to lane multiples."""
    w2, b2 = params["w2"], params["b2"]
    w3, b3 = params["w3"], params["b3"]
    wo, bo = params["wo"], params["bo"]

    s2 = params["bn2_gamma"] / jnp.sqrt(params["bn2_var"] + eps)
    t2 = params["bn2_beta"] - params["bn2_mean"] * s2
    s3 = params["bn3_gamma"] / jnp.sqrt(params["bn3_var"] + eps)
    t3 = params["bn3_beta"] - params["bn3_mean"] * s3

    # Fold BN into the preceding linear: y = (xW + b)*s + t == x(W*s) + (b*s + t)
    w2f = w2 * s2[None, :]
    b2f = b2 * s2 + t2
    w3f = w3 * s3[None, :]
    b3f = b3 * s3 + t3

    d_in = int(w2.shape[0])
    h1, h2, nc = int(w2.shape[1]), int(w3.shape[1]), int(wo.shape[1])
    h1p = _round_up(h1, 128)
    h2p = _round_up(h2, 128)
    ncp = _round_up(nc, 128)

    NEG = jnp.float32(-1e30)  # padded logits -> exp() == 0 -> no effect on softmax

    w2p = jnp.zeros((d_in, h1p), jnp.float32).at[:, :h1].set(w2f)
    b2p = jnp.zeros((1, h1p), jnp.float32).at[:, :h1].set(b2f)
    w3p = jnp.zeros((h1p, h2p), jnp.float32).at[:h1, :h2].set(w3f)
    b3p = jnp.zeros((1, h2p), jnp.float32).at[:, :h2].set(b3f)
    wop = jnp.zeros((h2p, ncp), jnp.float32).at[:h2, :nc].set(wo)
    bop = jnp.full((1, ncp), NEG, jnp.float32).at[:, :nc].set(bo)

    return {
        "w2": w2p, "b2": b2p,
        "w3": w3p, "b3": b3p,
        "wo": wop, "bo": bop,
        "input_dim": d_in, "num_class": nc,
    }


def multiclass_classification_forward(x, prepped):
    """x: (B, 1, D_in) float32 -> (B, 1, num_class) float32."""
    B = x.shape[0]
    d_in = prepped["input_dim"]
    nc = prepped["num_class"]
    h1p = prepped["w2"].shape[1]
    h2p = prepped["w3"].shape[1]
    ncp = prepped["wo"].shape[1]

    x2d = jnp.squeeze(x, axis=1)  # (B, D_in)  -- glue

    # Batch tiling: no wrapper-side pad; Pallas masks the ragged last tile.
    # Garbage rows read past B are confined to their own row (softmax is per-row) and
    # their output rows are masked on store.
    tb = _choose_batch_tile(B)
    grid = (pl.cdiv(B, tb),)

    const = lambda i: (0, 0)  # weights/biases stay resident across the batch grid

    out = pl.pallas_call(
        _mlp_softmax_kernel,
        out_shape=jax.ShapeDtypeStruct((B, ncp), jnp.float32),
        grid=grid,
        in_specs=[
            pl.BlockSpec((tb, d_in), lambda i: (i, 0)),
            pl.BlockSpec((d_in, h1p), const),
            pl.BlockSpec((1, h1p), const),
            pl.BlockSpec((h1p, h2p), const),
            pl.BlockSpec((1, h2p), const),
            pl.BlockSpec((h2p, ncp), const),
            pl.BlockSpec((1, ncp), const),
        ],
        out_specs=pl.BlockSpec((tb, ncp), lambda i: (i, 0)),
        compiler_params=pltpu.CompilerParams(dimension_semantics=("parallel",)),
    )(
        x2d,
        prepped["w2"], prepped["b2"],
        prepped["w3"], prepped["b3"],
        prepped["wo"], prepped["bo"],
    )

    return out[:, :nc][:, None, :]  # slice class padding, unsqueeze(1)  -- glue


# ----------------------------------------------------------------------------- params / reference

def init_params(key, input_dim, num_class):
    h1 = int(input_dim * 1.2)
    h2 = int(num_class * 0.2)
    ks = jax.random.split(key, 12)

    def lin(kw, kb, fan_in, fan_out):
        bound = 1.0 / jnp.sqrt(fan_in)
        w = jax.random.uniform(kw, (fan_in, fan_out), jnp.float32, -bound, bound)
        b = jax.random.uniform(kb, (fan_out,), jnp.float32, -bound, bound)
        return w, b

    w2, b2 = lin(ks[0], ks[1], input_dim, h1)
    w3, b3 = lin(ks[2], ks[3], h1, h2)
    wo, bo = lin(ks[4], ks[5], h2, num_class)

    return dict(
        w2=w2, b2=b2, w3=w3, b3=b3, wo=wo, bo=bo,
        bn2_gamma=jax.random.uniform(ks[6], (h1,), jnp.float32, 0.5, 1.5),
        bn2_beta=jax.random.normal(ks[7], (h1,)) * 0.1,
        bn2_mean=jax.random.normal(ks[8], (h1,)) * 0.1,
        bn2_var=jnp.abs(jax.random.normal(ks[9], (h1,))) + 0.5,
        bn3_gamma=jax.random.uniform(ks[10], (h2,), jnp.float32, 0.5, 1.5),
        bn3_beta=jax.random.normal(ks[11], (h2,)) * 0.1,
        bn3_mean=jnp.zeros((h2,), jnp.float32),
        bn3_var=jnp.ones((h2,), jnp.float32),
    )


def _reference_forward(x, params, eps=1e-5):
    """Pure-JAX eval-mode reference of the PyTorch module."""
    x2d = jnp.squeeze(x, axis=1)
    h = x2d @ params["w2"] + params["b2"]
    h = (h - params["bn2_mean"]) / jnp.sqrt(params["bn2_var"] + eps) * params["bn2_gamma"] + params["bn2_beta"]
    h = jnp.maximum(h, 0.0)
    h = h @ params["w3"] + params["b3"]
    h = (h - params["bn3_mean"]) / jnp.sqrt(params["bn3_var"] + eps) * params["bn3_gamma"] + params["bn3_beta"]
    h = jnp.maximum(h, 0.0)
    logits = h @ params["wo"] + params["bo"]
    return jax.nn.softmax(logits, axis=-1)[:, None, :]


# ----------------------------------------------------------------------------- main

if __name__ == "__main__":
    key = jax.random.PRNGKey(0)
    k_x, k_x2, k_p = jax.random.split(key, 3)

    input_dim, num_class = 32, 40  # h1 = 38, h2 = 8
    params = init_params(k_p, input_dim, num_class)
    prepped = prepare_params(params)  # BN folding + padding done once, off the hot path

    # Case 1: tiny batch, single grid step.
    B = 8
    x = jax.random.normal(k_x, (B, 1, input_dim), jnp.float32)
    y = jax.block_until_ready(multiclass_classification_forward(x, prepped))
    assert y.shape == (B, 1, num_class)
    assert bool(jnp.allclose(jnp.sum(y, axis=-1), 1.0, atol=1e-5))
    assert bool(jnp.allclose(y, _reference_forward(x, params), atol=1e-5, rtol=1e-5))

    # Case 2: ragged batch -> multi-step grid with a masked last tile (no wrapper pad).
    B2 = 20  # tb = 16, grid = 2, last tile has 4 real rows
    x2 = jax.random.normal(k_x2, (B2, 1, input_dim), jnp.float32)
    y2 = jax.block_until_ready(multiclass_classification_forward(x2, prepped))
    assert y2.shape == (B2, 1, num_class)
    assert bool(jnp.allclose(jnp.sum(y2, axis=-1), 1.0, atol=1e-5))
    assert bool(jnp.allclose(y2, _reference_forward(x2, params), atol=1e-5, rtol=1e-5))

    print("KERNEL_OK")
</pallas_src>

<mosaic_0001>
module attributes {stable_mosaic.version = 11 : i64} {
  func.func @_mlp_softmax_kernel(%arg0: i32, %arg1: memref<8x32xf32, #tpu.memory_space<vmem>>, %arg2: memref<32x128xf32, #tpu.memory_space<vmem>>, %arg3: memref<1x128xf32, #tpu.memory_space<vmem>>, %arg4: memref<128x128xf32, #tpu.memory_space<vmem>>, %arg5: memref<1x128xf32, #tpu.memory_space<vmem>>, %arg6: memref<128x128xf32, #tpu.memory_space<vmem>>, %arg7: memref<1x128xf32, #tpu.memory_space<vmem>>, %arg8: memref<8x128xf32, #tpu.memory_space<vmem>>) attributes {dimension_semantics = [#tpu.dimension_semantics<parallel>], iteration_bounds = array<i64: 1>, scalar_prefetch = 0 : i64, scratch_operands = 0 : i64, tpu.core_type = #tpu.core_type<tc>, window_params = [{transform_indices = @transform_0, window_bounds = array<i64: 8, 32>}, {pipeline_mode = #tpu.pipeline_mode<synchronous>, transform_indices = @transform_1, window_bounds = array<i64: 32, 128>}, {pipeline_mode = #tpu.pipeline_mode<synchronous>, transform_indices = @transform_2, window_bounds = array<i64: 1, 128>}, {pipeline_mode = #tpu.pipeline_mode<synchronous>, transform_indices = @transform_3, window_bounds = array<i64: 128, 128>}, {pipeline_mode = #tpu.pipeline_mode<synchronous>, transform_indices = @transform_4, window_bounds = array<i64: 1, 128>}, {pipeline_mode = #tpu.pipeline_mode<synchronous>, transform_indices = @transform_5, window_bounds = array<i64: 128, 128>}, {pipeline_mode = #tpu.pipeline_mode<synchronous>, transform_indices = @transform_6, window_bounds = array<i64: 1, 128>}, {transform_indices = @transform_7, window_bounds = array<i64: 8, 128>}]} {
    %c0 = arith.constant 0 : index
    %c0_0 = arith.constant 0 : index
    %0 = vector.load %arg1[%c0, %c0_0] : memref<8x32xf32, #tpu.memory_space<vmem>>, vector<8x32xf32>
    %c0_1 = arith.constant 0 : index
    %c0_2 = arith.constant 0 : index
    %1 = vector.load %arg2[%c0_1, %c0_2] : memref<32x128xf32, #tpu.memory_space<vmem>>, vector<32x128xf32>
    %cst = arith.constant dense<0.000000e+00> : vector<8x128xf32>
    %2 = tpu.matmul %0, %1, %cst {dimension_numbers = #tpu.dot_dimension_numbers<[1], [0], [0], [1], [0, 0, 1, 1], [], []>} : vector<8x32xf32>, vector<32x128xf32>, vector<8x128xf32> -> vector<8x128xf32>
    %c0_3 = arith.constant 0 : index
    %c0_4 = arith.constant 0 : index
    %3 = vector.load %arg3[%c0_3, %c0_4] : memref<1x128xf32, #tpu.memory_space<vmem>>, vector<1x128xf32>
    %4 = vector.broadcast %3 : vector<1x128xf32> to vector<8x128xf32>
    %5 = arith.addf %2, %4 : vector<8x128xf32>
    %cst_5 = arith.constant 0.000000e+00 : f32
    %6 = vector.broadcast %cst_5 : f32 to vector<8x128xf32>
    %7 = arith.maximumf %5, %6 : vector<8x128xf32>
    %c0_6 = arith.constant 0 : index
    %c0_7 = arith.constant 0 : index
    %8 = vector.load %arg4[%c0_6, %c0_7] : memref<128x128xf32, #tpu.memory_space<vmem>>, vector<128x128xf32>
    %cst_8 = arith.constant dense<0.000000e+00> : vector<8x128xf32>
    %9 = tpu.matmul %7, %8, %cst_8 {dimension_numbers = #tpu.dot_dimension_numbers<[1], [0], [0], [1], [0, 0, 1, 1], [], []>} : vector<8x128xf32>, vector<128x128xf32>, vector<8x128xf32> -> vector<8x128xf32>
    %c0_9 = arith.constant 0 : index
    %c0_10 = arith.constant 0 : index
    %10 = vector.load %arg5[%c0_9, %c0_10] : memref<1x128xf32, #tpu.memory_space<vmem>>, vector<1x128xf32>
    %11 = vector.broadcast %10 : vector<1x128xf32> to vector<8x128xf32>
    %12 = arith.addf %9, %11 : vector<8x128xf32>
    %cst_11 = arith.constant 0.000000e+00 : f32
    %13 = vector.broadcast %cst_11 : f32 to vector<8x128xf32>
    %14 = arith.maximumf %12, %13 : vector<8x128xf32>
    %c0_12 = arith.constant 0 : index
    %c0_13 = arith.constant 0 : index
    %15 = vector.load %arg6[%c0_12, %c0_13] : memref<128x128xf32, #tpu.memory_space<vmem>>, vector<128x128xf32>
    %cst_14 = arith.constant dense<0.000000e+00> : vector<8x128xf32>
    %16 = tpu.matmul %14, %15, %cst_14 {dimension_numbers = #tpu.dot_dimension_numbers<[1], [0], [0], [1], [0, 0, 1, 1], [], []>} : vector<8x128xf32>, vector<128x128xf32>, vector<8x128xf32> -> vector<8x128xf32>
    %c0_15 = arith.constant 0 : index
    %c0_16 = arith.constant 0 : index
    %17 = vector.load %arg7[%c0_15, %c0_16] : memref<1x128xf32, #tpu.memory_space<vmem>>, vector<1x128xf32>
    %18 = vector.broadcast %17 : vector<1x128xf32> to vector<8x128xf32>
    %19 = arith.addf %16, %18 : vector<8x128xf32>
    %cst_17 = arith.constant dense<0xFF800000> : vector<8xf32>
    %20 = vector.multi_reduction <maximumf>, %19, %cst_17 [1] : vector<8x128xf32> to vector<8xf32>
    %21 = vector.shape_cast %20 : vector<8xf32> to vector<8x1xf32>
    %22 = vector.broadcast %21 : vector<8x1xf32> to vector<8x128xf32>
    %23 = arith.subf %19, %22 : vector<8x128xf32>
    %24 = math.exp %23 : vector<8x128xf32>
    %cst_18 = arith.constant dense<0.000000e+00> : vector<8xf32>
    %25 = vector.multi_reduction <add>, %24, %cst_18 [1] : vector<8x128xf32> to vector<8xf32>
    %26 = vector.shape_cast %25 : vector<8xf32> to vector<8x1xf32>
    %27 = tpu.reciprocal %26 : vector<8x1xf32> -> vector<8x1xf32>
    %28 = vector.broadcast %27 : vector<8x1xf32> to vector<8x128xf32>
    %29 = arith.mulf %24, %28 : vector<8x128xf32>
    %c0_19 = arith.constant 0 : index
    %c0_20 = arith.constant 0 : index
    %30 = vector.load %arg8[%c0_19, %c0_20] : memref<8x128xf32, #tpu.memory_space<vmem>>, vector<8x128xf32>
    tpu.vector_store %arg8[%c0_19, %c0_20], %29 {strides = array<i32>} : memref<8x128xf32, #tpu.memory_space<vmem>>, vector<8x128xf32>,
    return
  }
  func.func @transform_0(%arg0: i32) -> (i32, i32) {
    %c0_i32 = arith.constant 0 : i32
    %c0_i32_0 = arith.constant 0 : i32
    return %arg0, %c0_i32 : i32, i32
  }
  func.func @transform_1(%arg0: i32) -> (i32, i32) {
    %c0_i32 = arith.constant 0 : i32
    %c0_i32_0 = arith.constant 0 : i32
    %c0_i32_1 = arith.constant 0 : i32
    return %c0_i32, %c0_i32_0 : i32, i32
  }
  func.func @transform_2(%arg0: i32) -> (i32, i32) {
    %c0_i32 = arith.constant 0 : i32
    %c0_i32_0 = arith.constant 0 : i32
    %c0_i32_1 = arith.constant 0 : i32
    return %c0_i32, %c0_i32_0 : i32, i32
  }
  func.func @transform_3(%arg0: i32) -> (i32, i32) {
    %c0_i32 = arith.constant 0 : i32
    %c0_i32_0 = arith.constant 0 : i32
    %c0_i32_1 = arith.constant 0 : i32
    return %c0_i32, %c0_i32_0 : i32, i32
  }
  func.func @transform_4(%arg0: i32) -> (i32, i32) {
    %c0_i32 = arith.constant 0 : i32
    %c0_i32_0 = arith.constant 0 : i32
    %c0_i32_1 = arith.constant 0 : i32
    return %c0_i32, %c0_i32_0 : i32, i32
  }
  func.func @transform_5(%arg0: i32) -> (i32, i32) {
    %c0_i32 = arith.constant 0 : i32
    %c0_i32_0 = arith.constant 0 : i32
    %c0_i32_1 = arith.constant 0 : i32
    return %c0_i32, %c0_i32_0 : i32, i32
  }
  func.func @transform_6(%arg0: i32) -> (i32, i32) {
    %c0_i32 = arith.constant 0 : i32
    %c0_i32_0 = arith.constant 0 : i32
    %c0_i32_1 = arith.constant 0 : i32
    return %c0_i32, %c0_i32_0 : i32, i32
  }
  func.func @transform_7(%arg0: i32) -> (i32, i32) {
    %c0_i32 = arith.constant 0 : i32
    %c0_i32_0 = arith.constant 0 : i32
    return %arg0, %c0_i32 : i32, i32
  }
}

</mosaic_0001>

<llo_original>
// kernel: tpu_custom_call.1
$region0: #{tpu_custom_call.1}
  #allocation0 [shape = 'u32[]', space=smem, size = 0x4, offset = 0x4, fixed_abs, tag = 'smem constant byte address 0x4 - core index']
  #allocation1 [shape = 'u32[144,128]{1,0:T(1,128)}', space=vmem, size = 0x12000, scoped, tag = 'internal scratch']
  %s0 = inlined_call_operand.hbm [shape: f32[8,32], index: 0, kind: input, shape index: {}]
  %s1 = inlined_call_operand.hbm [shape: f32[32,128], index: 1, kind: input, shape index: {}]
  %s2 = inlined_call_operand.vmem [shape: f32[1,128], index: 2, kind: input, shape index: {}]
  %s3 = inlined_call_operand.hbm [shape: f32[128,128], index: 3, kind: input, shape index: {}]
  %s4 = inlined_call_operand.vmem [shape: f32[1,128], index: 4, kind: input, shape index: {}]
  %s5 = inlined_call_operand.hbm [shape: f32[128,128], index: 5, kind: input, shape index: {}]
  %s6 = inlined_call_operand.vmem [shape: f32[1,128], index: 6, kind: input, shape index: {}]
  %s7 = inlined_call_operand.hbm [shape: f32[8,128], index: 7, kind: output, shape index: {}]
  %s8 = sld [smem:[#allocation0]]
  $region54: #{tpu_custom_call.1} parent=0
    _
  %s10 = ssub.s32 1, %s8
  %s11 = scalar_select 0, %s10, %s8
  $region1: #{tpu_custom_call.1} parent=0
    #allocation2 [shape = 'u8[4096]{0}', space=vmem, size = 0x1000, scoped, tag = 'input window, operand 0, single buffered']
    #allocation3 [shape = 's32[1]{0}', space=sflag, size = 0x4, scoped, tag = 'scoped memory for tpu_custom_call.1']
    #allocation4 [shape = 's32[1]{0}', space=sflag, size = 0x4, scoped, tag = 'scoped memory for tpu_custom_call.1']
    #allocation5 [shape = 'u8[16384]{0}', space=vmem, size = 0x4000, scoped, tag = 'input window, operand 1, single buffered']
    #allocation6 [shape = 's32[1]{0}', space=sflag, size = 0x4, scoped, tag = 'scoped memory for tpu_custom_call.1']
    #allocation7 [shape = 'u8[65536]{0}', space=vmem, size = 0x10000, scoped, tag = 'input window, operand 3, single buffered']
    #allocation8 [shape = 'u8[65536]{0}', space=vmem, size = 0x10000, scoped, tag = 'input window, operand 5, single buffered']
    #allocation9 [shape = 's32[1]{0}', space=sflag, size = 0x4, scoped, tag = 'scoped memory for tpu_custom_call.1']
    #allocation10 [shape = 'u8[4096]{0}', space=vmem, size = 0x1000, scoped, tag = 'output window, operand 0, single buffered']
    %12 = vsyncpa [#allocation3], 0
    %13 = vsyncpa [#allocation6], 0
    %14 = vsyncpa [#allocation9], 0
    %15 = vsyncpa [#allocation4], 0
    // Predicated region
    $region2: #{tpu_custom_call.1} parent=1 // pred_check
      _
    $region3: #{tpu_custom_call.1} parent=1 // pred_check_branch
      %17 = sbr.rel (0) target = $region5
    $region4: #{tpu_custom_call.1} parent=1 // pred_region
      %s19 = ssub.s32 128, 128
      %20 = vsyncadd [#allocation3], %s19
      %s22 = sshll.u32 [#allocation2], 4
      %s23 = int_to_ptr.vmem [resolvable:$true] %s22
      %25 = dma.hbm_to_vmem [thread:$0]  %s0, 128, %s23, [#allocation3]
    $region5: #{tpu_custom_call.1} parent=1 // pred_fallthru
      _
    // Predicated region
    $region6: #{tpu_custom_call.1} parent=1 // pred_check
      _
    $region7: #{tpu_custom_call.1} parent=1 // pred_check_branch
      %27 = sbr.rel (0) target = $region9
    $region8: #{tpu_custom_call.1} parent=1 // pred_region
      %s29 = ssub.s32 512, 512
      %30 = vsyncadd [#allocation6], %s29
      %s31 = sshll.u32 [#allocation5], 4
      %s32 = int_to_ptr.vmem [resolvable:$true] %s31
      %37 = dma.hbm_to_vmem [thread:$0]  %s1, 512, %s32, [#allocation6], 128, 128, 8
    $region9: #{tpu_custom_call.1} parent=1 // pred_fallthru
      _
    // Predicated region
    $region10: #{tpu_custom_call.1} parent=1 // pred_check
      _
    $region11: #{tpu_custom_call.1} parent=1 // pred_check_branch
      %39 = sbr.rel (0) target = $region13
    $region12: #{tpu_custom_call.1} parent=1 // pred_region
      _
    $region13: #{tpu_custom_call.1} parent=1 // pred_fallthru
      _
    // Predicated region
    $region14: #{tpu_custom_call.1} parent=1 // pred_check
      _
    $region15: #{tpu_custom_call.1} parent=1 // pred_check_branch
      %41 = sbr.rel (0) target = $region17
    $region16: #{tpu_custom_call.1} parent=1 // pred_region
      %s43 = ssub.s32 2048, 2048
      %44 = vsyncadd [#allocation6], %s43
      %s45 = sshll.u32 [#allocation7], 4
      %s46 = int_to_ptr.vmem [resolvable:$true] %s45
      %51 = dma.hbm_to_vmem [thread:$0]  %s3, 2048, %s46, [#allocation6], 128, 128, 8
    $region17: #{tpu_custom_call.1} parent=1 // pred_fallthru
      _
    // Predicated region
    $region18: #{tpu_custom_call.1} parent=1 // pred_check
      _
    $region19: #{tpu_custom_call.1} parent=1 // pred_check_branch
      %53 = sbr.rel (0) target = $region21
    $region20: #{tpu_custom_call.1} parent=1 // pred_region
      _
    $region21: #{tpu_custom_call.1} parent=1 // pred_fallthru
      _
    // Predicated region
    $region22: #{tpu_custom_call.1} parent=1 // pred_check
      _
    $region23: #{tpu_custom_call.1} parent=1 // pred_check_branch
      %55 = sbr.rel (0) target = $region25
    $region24: #{tpu_custom_call.1} parent=1 // pred_region
      %s57 = ssub.s32 2048, 2048
      %58 = vsyncadd [#allocation9], %s57
      %s59 = sshll.u32 [#allocation8], 4
      %s60 = int_to_ptr.vmem [resolvable:$true] %s59
      %65 = dma.hbm_to_vmem [thread:$0]  %s5, 2048, %s60, [#allocation9], 128, 128, 8
    $region25: #{tpu_custom_call.1} parent=1 // pred_fallthru
      _
    // Predicated region
    $region26: #{tpu_custom_call.1} parent=1 // pred_check
      _
    $region27: #{tpu_custom_call.1} parent=1 // pred_check_branch
      %67 = sbr.rel (0) target = $region29
    $region28: #{tpu_custom_call.1} parent=1 // pred_region
      _
    $region29: #{tpu_custom_call.1} parent=1 // pred_fallthru
      _
    // Predicated region
    $region30: #{tpu_custom_call.1} parent=1 // pred_check
      _
    $region31: #{tpu_custom_call.1} parent=1 // pred_check_branch
      %69 = sbr.rel (0) target = $region33
    $region32: #{tpu_custom_call.1} parent=1 // pred_region
      %70 = dma.done [#allocation3], 128
    $region33: #{tpu_custom_call.1} parent=1 // pred_fallthru
      _
    // Predicated region
    $region34: #{tpu_custom_call.1} parent=1 // pred_check
      _
    $region35: #{tpu_custom_call.1} parent=1 // pred_check_branch
      %72 = sbr.rel (0) target = $region37
    $region36: #{tpu_custom_call.1} parent=1 // pred_region
      %73 = dma.done [#allocation6], 512
    $region37: #{tpu_custom_call.1} parent=1 // pred_fallthru
      _
    // Predicated region
    $region38: #{tpu_custom_call.1} parent=1 // pred_check
      _
    $region39: #{tpu_custom_call.1} parent=1 // pred_check_branch
      %75 = sbr.rel (0) target = $region41
    $region40: #{tpu_custom_call.1} parent=1 // pred_region
      %76 = dma.done [#allocation6], 2048
    $region41: #{tpu_custom_call.1} parent=1 // pred_fallthru
      _
    // Predicated region
    $region42: #{tpu_custom_call.1} parent=1 // pred_check
      _
    $region43: #{tpu_custom_call.1} parent=1 // pred_check_branch
      %78 = sbr.rel (0) target = $region45
    $region44: #{tpu_custom_call.1} parent=1 // pred_region
      %79 = dma.done [#allocation9], 2048
    $region45: #{tpu_custom_call.1} parent=1 // pred_fallthru
      _
    %v80 = vld [vmem:[#allocation2] sm:$0xff]
    %v81 = vld [vmem:[#allocation5] sm:$0xff]
    %v82 = vld [vmem:[#allocation5 + $0x8] sm:$0xff]
    %v83 = vld [vmem:[#allocation5 + $0x10] sm:$0xff]
    %v84 = vld [vmem:[#allocation5 + $0x18] sm:$0xff]
    %v85 = vld [vmem:[%s2] sm:$0x1]
    %v87 = vlaneseq
    %v88 = vshrl.u32 %v87, 7
    %v89 = vsub.s32 0, %v88
    %v90 = vrot.slane %v85, %v89
    %vm92 = vcmask 261120
    %v94 = vsel %vm92, %v80, 0
    %96 = vmatprep.subr.mxu0 0.0
    %97 = vmatpush1.msra.mxu0 0.0
    %98 = vmatprep.subr.mxu0 0.0
    %99 = vmatpush1.msra.mxu0 0.0
    %100 = vmatprep.subr.mxu0 0.0
    %101 = vmatpush1.msra.mxu0 0.0
    %102 = vmatprep.subr.mxu0 0.0
    %103 = vmatpush1.msra.mxu0 0.0
    %104 = vmatprep.subr.mxu0 0.0
    %105 = vmatpush1.msra.mxu0 0.0
    %106 = vmatprep.subr.mxu0 0.0
    %107 = vmatpush1.msra.mxu0 0.0
    %108 = vmatprep.subr.mxu0 0.0
    %109 = vmatpush1.msra.mxu0 0.0
    %110 = vmatprep.subr.mxu0 0.0
    %111 = vmatpush1.msra.mxu0 0.0
    %112 = vmatprep.subr.mxu0 0.0
    %113 = vmatpush1.msra.mxu0 0.0
    %114 = vmatprep.subr.mxu0 0.0
    %115 = vmatpush1.msra.mxu0 0.0
    %116 = vmatprep.subr.mxu0 0.0
    %117 = vmatpush1.msra.mxu0 0.0
    %118 = vmatprep.subr.mxu0 0.0
    %119 = vmatpush1.msra.mxu0 0.0
    %120 = vmatprep.subr.mxu0 0.0
    %121 = vmatpush1.msra.mxu0 %v84
    %122 = vmatprep.subr.mxu0 0.0
    %123 = vmatpush1.msra.mxu0 %v83
    %124 = vmatprep.subr.mxu0 0.0
    %125 = vmatpush1.msra.mxu0 %v82
    %126 = vmatprep.subr.mxu0 0.0
    %127 = vmatpush1.msra.mxu0 %v81
    %128 = vmatprep.subr.mxu0 0.0
    %129 = vmatpush2.msra.mxu0 0.0
    %130 = vmatprep.subr.mxu0 0.0
    %131 = vmatpush2.msra.mxu0 0.0
    %132 = vmatprep.subr.mxu0 0.0
    %133 = vmatpush2.msra.mxu0 0.0
    %134 = vmatprep.subr.mxu0 0.0
    %135 = vmatpush2.msra.mxu0 0.0
    %136 = vmatprep.subr.mxu0 0.0
    %137 = vmatpush2.msra.mxu0 0.0
    %138 = vmatprep.subr.mxu0 0.0
    %139 = vmatpush2.msra.mxu0 0.0
    %140 = vmatprep.subr.mxu0 0.0
    %141 = vmatpush2.msra.mxu0 0.0
    %142 = vmatprep.subr.mxu0 0.0
    %143 = vmatpush2.msra.mxu0 0.0
    %144 = vmatprep.subr.mxu0 0.0
    %145 = vmatpush2.msra.mxu0 0.0
    %146 = vmatprep.subr.mxu0 0.0
    %147 = vmatpush2.msra.mxu0 0.0
    %148 = vmatprep.subr.mxu0 0.0
    %149 = vmatpush2.msra.mxu0 0.0
    %150 = vmatprep.subr.mxu0 0.0
    %151 = vmatpush2.msra.mxu0 0.0
    %152 = vmatprep.subr.mxu0 0.0
    %153 = vmatpush2.msra.mxu0 0.0
    %154 = vmatprep.subr.mxu0 0.0
    %155 = vmatpush2.msra.mxu0 0.0
    %156 = vmatprep.subr.mxu0 0.0
    %157 = vmatpush2.msra.mxu0 0.0
    %158 = vmatprep.subr.mxu0 0.0
    %159 = vmatpush2.msra.mxu0 0.0
    %160 = vmatprep.mubr.f32.mxu0 0.0
    %161 = vmatmul.mubr.f32.gmra.mxu0 %v94
    %v162 = vpop.f32.mrf.mxu0
    %v163 = vadd.f32 %v90, %v162
    %v164 = vpop.f32.mrf.mxu0
    %165 = vdwg.mxu0
    %v166 = vmax.f32 %v163, 0.0
    %v167 = vld [vmem:[#allocation7] sm:$0xff]
    %v168 = vld [vmem:[#allocation7 + $0x8] sm:$0xff]
    %v169 = vld [vmem:[#allocation7 + $0x10] sm:$0xff]
    %v170 = vld [vmem:[#allocation7 + $0x18] sm:$0xff]
    %v171 = vld [vmem:[#allocation7 + $0x20] sm:$0xff]
    %v172 = vld [vmem:[#allocation7 + $0x28] sm:$0xff]
    %v173 = vld [vmem:[#allocation7 + $0x30] sm:$0xff]
    %v174 = vld [vmem:[#allocation7 + $0x38] sm:$0xff]
    %v175 = vld [vmem:[#allocation7 + $0x40] sm:$0xff]
    %v176 = vld [vmem:[#allocation7 + $0x48] sm:$0xff]
    %v177 = vld [vmem:[#allocation7 + $0x50] sm:$0xff]
    %v178 = vld [vmem:[#allocation7 + $0x58] sm:$0xff]
    %v179 = vld [vmem:[#allocation7 + $0x60] sm:$0xff]
    %v180 = vld [vmem:[#allocation7 + $0x68] sm:$0xff]
    %v181 = vld [vmem:[#allocation7 + $0x70] sm:$0xff]
    %v182 = vld [vmem:[#allocation7 + $0x78] sm:$0xff]
    %v183 = vld [vmem:[%s4] sm:$0x1]
    %v185 = vlaneseq
    %v186 = vshrl.u32 %v185, 7
    %v187 = vsub.s32 0, %v186
    %v188 = vrot.slane %v183, %v187
    %190 = vmatprep.subr.mxu0 0.0
    %191 = vmatpush1.msra.mxu0 %v182
    %192 = vmatprep.subr.mxu0 0.0
    %193 = vmatpush1.msra.mxu0 %v181
    %194 = vmatprep.subr.mxu0 0.0
    %195 = vmatpush1.msra.mxu0 %v180
    %196 = vmatprep.subr.mxu0 0.0
    %197 = vmatpush1.msra.mxu0 %v179
    %198 = vmatprep.subr.mxu0 0.0
    %199 = vmatpush1.msra.mxu0 %v178
    %200 = vmatprep.subr.mxu0 0.0
    %201 = vmatpush1.msra.mxu0 %v177
    %202 = vmatprep.subr.mxu0 0.0
    %203 = vmatpush1.msra.mxu0 %v176
    %204 = vmatprep.subr.mxu0 0.0
    %205 = vmatpush1.msra.mxu0 %v175
    %206 = vmatprep.subr.mxu0 0.0
    %207 = vmatpush1.msra.mxu0 %v174
    %208 = vmatprep.subr.mxu0 0.0
    %209 = vmatpush1.msra.mxu0 %v173
    %210 = vmatprep.subr.mxu0 0.0
    %211 = vmatpush1.msra.mxu0 %v172
    %212 = vmatprep.subr.mxu0 0.0
    %213 = vmatpush1.msra.mxu0 %v171
    %214 = vmatprep.subr.mxu0 0.0
    %215 = vmatpush1.msra.mxu0 %v170
    %216 = vmatprep.subr.mxu0 0.0
    %217 = vmatpush1.msra.mxu0 %v169
    %218 = vmatprep.subr.mxu0 0.0
    %219 = vmatpush1.msra.mxu0 %v168
    %220 = vmatprep.subr.mxu0 0.0
    %221 = vmatpush1.msra.mxu0 %v167
    %222 = vmatprep.subr.mxu0 0.0
    %223 = vmatpush2.msra.mxu0 0.0
    %224 = vmatprep.subr.mxu0 0.0
    %225 = vmatpush2.msra.mxu0 0.0
    %226 = vmatprep.subr.mxu0 0.0
    %227 = vmatpush2.msra.mxu0 0.0
    %228 = vmatprep.subr.mxu0 0.0
    %229 = vmatpush2.msra.mxu0 0.0
    %230 = vmatprep.subr.mxu0 0.0
    %231 = vmatpush2.msra.mxu0 0.0
    %232 = vmatprep.subr.mxu0 0.0
    %233 = vmatpush2.msra.mxu0 0.0
    %234 = vmatprep.subr.mxu0 0.0
    %235 = vmatpush2.msra.mxu0 0.0
    %236 = vmatprep.subr.mxu0 0.0
    %237 = vmatpush2.msra.mxu0 0.0
    %238 = vmatprep.subr.mxu0 0.0
    %239 = vmatpush2.msra.mxu0 0.0
    %240 = vmatprep.subr.mxu0 0.0
    %241 = vmatpush2.msra.mxu0 0.0
    %242 = vmatprep.subr.mxu0 0.0
    %243 = vmatpush2.msra.mxu0 0.0
    %244 = vmatprep.subr.mxu0 0.0
    %245 = vmatpush2.msra.mxu0 0.0
    %246 = vmatprep.subr.mxu0 0.0
    %247 = vmatpush2.msra.mxu0 0.0
    %248 = vmatprep.subr.mxu0 0.0
    %249 = vmatpush2.msra.mxu0 0.0
    %250 = vmatprep.subr.mxu0 0.0
    %251 = vmatpush2.msra.mxu0 0.0
    %252 = vmatprep.subr.mxu0 0.0
    %253 = vmatpush2.msra.mxu0 0.0
    %254 = vmatprep.mubr.f32.mxu0 0.0
    %255 = vmatmul.mubr.f32.gmra.mxu0 %v166
    %v256 = vpop.f32.mrf.mxu0
    %v257 = vadd.f32 %v188, %v256
    %v258 = vpop.f32.mrf.mxu0
    %259 = vdwg.mxu0
    %v260 = vmax.f32 %v257, 0.0
    %v261 = vld [vmem:[#allocation8] sm:$0xff]
    %v262 = vld [vmem:[#allocation8 + $0x8] sm:$0xff]
    %v263 = vld [vmem:[#allocation8 + $0x10] sm:$0xff]
    %v264 = vld [vmem:[#allocation8 + $0x18] sm:$0xff]
    %v265 = vld [vmem:[#allocation8 + $0x20] sm:$0xff]
    %v266 = vld [vmem:[#allocation8 + $0x28] sm:$0xff]
    %v267 = vld [vmem:[#allocation8 + $0x30] sm:$0xff]
    %v268 = vld [vmem:[#allocation8 + $0x38] sm:$0xff]
    %v269 = vld [vmem:[#allocation8 + $0x40] sm:$0xff]
    %v270 = vld [vmem:[#allocation8 + $0x48] sm:$0xff]
    %v271 = vld [vmem:[#allocation8 + $0x50] sm:$0xff]
    %v272 = vld [vmem:[#allocation8 + $0x58] sm:$0xff]
    %v273 = vld [vmem:[#allocation8 + $0x60] sm:$0xff]
    %v274 = vld [vmem:[#allocation8 + $0x68] sm:$0xff]
    %v275 = vld [vmem:[#allocation8 + $0x70] sm:$0xff]
    %v276 = vld [vmem:[#allocation8 + $0x78] sm:$0xff]
    %v277 = vld [vmem:[%s6] sm:$0x1]
    %v279 = vlaneseq
    %v280 = vshrl.u32 %v279, 7
    %v281 = vsub.s32 0, %v280
    %v282 = vrot.slane %v277, %v281
    %284 = vmatprep.subr.mxu0 0.0
    %285 = vmatpush1.msra.mxu0 %v276
    %286 = vmatprep.subr.mxu0 0.0
    %287 = vmatpush1.msra.mxu0 %v275
    %288 = vmatprep.subr.mxu0 0.0
    %289 = vmatpush1.msra.mxu0 %v274
    %290 = vmatprep.subr.mxu0 0.0
    %291 = vmatpush1.msra.mxu0 %v273
    %292 = vmatprep.subr.mxu0 0.0
    %293 = vmatpush1.msra.mxu0 %v272
    %294 = vmatprep.subr.mxu0 0.0
    %295 = vmatpush1.msra.mxu0 %v271
    %296 = vmatprep.subr.mxu0 0.0
    %297 = vmatpush1.msra.mxu0 %v270
    %298 = vmatprep.subr.mxu0 0.0
    %299 = vmatpush1.msra.mxu0 %v269
    %300 = vmatprep.subr.mxu0 0.0
    %301 = vmatpush1.msra.mxu0 %v268
    %302 = vmatprep.subr.mxu0 0.0
    %303 = vmatpush1.msra.mxu0 %v267
    %304 = vmatprep.subr.mxu0 0.0
    %305 = vmatpush1.msra.mxu0 %v266
    %306 = vmatprep.subr.mxu0 0.0
    %307 = vmatpush1.msra.mxu0 %v265
    %308 = vmatprep.subr.mxu0 0.0
    %309 = vmatpush1.msra.mxu0 %v264
    %310 = vmatprep.subr.mxu0 0.0
    %311 = vmatpush1.msra.mxu0 %v263
    %312 = vmatprep.subr.mxu0 0.0
    %313 = vmatpush1.msra.mxu0 %v262
    %314 = vmatprep.subr.mxu0 0.0
    %315 = vmatpush1.msra.mxu0 %v261
    %316 = vmatprep.subr.mxu0 0.0
    %317 = vmatpush2.msra.mxu0 0.0
    %318 = vmatprep.subr.mxu0 0.0
    %319 = vmatpush2.msra.mxu0 0.0
    %320 = vmatprep.subr.mxu0 0.0
    %321 = vmatpush2.msra.mxu0 0.0
    %322 = vmatprep.subr.mxu0 0.0
    %323 = vmatpush2.msra.mxu0 0.0
    %324 = vmatprep.subr.mxu0 0.0
    %325 = vmatpush2.msra.mxu0 0.0
    %326 = vmatprep.subr.mxu0 0.0
    %327 = vmatpush2.msra.mxu0 0.0
    %328 = vmatprep.subr.mxu0 0.0
    %329 = vmatpush2.msra.mxu0 0.0
    %330 = vmatprep.subr.mxu0 0.0
    %331 = vmatpush2.msra.mxu0 0.0
    %332 = vmatprep.subr.mxu0 0.0
    %333 = vmatpush2.msra.mxu0 0.0
    %334 = vmatprep.subr.mxu0 0.0
    %335 = vmatpush2.msra.mxu0 0.0
    %336 = vmatprep.subr.mxu0 0.0
    %337 = vmatpush2.msra.mxu0 0.0
    %338 = vmatprep.subr.mxu0 0.0
    %339 = vmatpush2.msra.mxu0 0.0
    %340 = vmatprep.subr.mxu0 0.0
    %341 = vmatpush2.msra.mxu0 0.0
    %342 = vmatprep.subr.mxu0 0.0
    %343 = vmatpush2.msra.mxu0 0.0
    %344 = vmatprep.subr.mxu0 0.0
    %345 = vmatpush2.msra.mxu0 0.0
    %346 = vmatprep.subr.mxu0 0.0
    %347 = vmatpush2.msra.mxu0 0.0
    %348 = vmatprep.mubr.f32.mxu0 0.0
    %349 = vmatmul.mubr.f32.gmra.mxu0 %v260
    %v350 = vpop.f32.mrf.mxu0
    %v351 = vadd.f32 %v282, %v350
    %v352 = vpop.f32.mrf.mxu0
    %353 = vdwg.mxu0
    %354 = vmax.xlane.f32.xlu0 %v351
    %v355 = vpop.xlane.xlu0 %354
    %v356 = vsub.f32 %v351, %v355
    %v357 = vmul.f32 %v356, 1.442695
    %v358 = vpow.pop %v357
    %359 = vadd.xlane.f32.xlu0 %v358
    %v360 = vpop.xlane.xlu0 %359
    %v361 = vrcp.pop %v360
    %v362 = vmul.f32 %v358, %v361
    %363 = vst [vmem:[#allocation10] sm:$0xff] %v362
    // Predicated region
    $region46: #{tpu_custom_call.1} parent=1 // pred_check
      _
    $region47: #{tpu_custom_call.1} parent=1 // pred_check_branch
      %365 = sbr.rel (0) target = $region49
    $region48: #{tpu_custom_call.1} parent=1 // pred_region
      %s367 = ssub.s32 128, 128
      %368 = vsyncadd [#allocation4], %s367
      %s370 = sshll.u32 [#allocation10], 4
      %s371 = int_to_ptr.vmem [resolvable:$true] %s370
      %373 = dma.vmem_to_hbm [thread:$0]  %s371, 128, %s7, [#allocation4]
    $region49: #{tpu_custom_call.1} parent=1 // pred_fallthru
      _
    // Predicated region
    $region50: #{tpu_custom_call.1} parent=1 // pred_check
      _
    $region51: #{tpu_custom_call.1} parent=1 // pred_check_branch
      %375 = sbr.rel (0) target = $region53
    $region52: #{tpu_custom_call.1} parent=1 // pred_region
      %376 = dma.done [#allocation4], 128
    $region53: #{tpu_custom_call.1} parent=1 // pred_fallthru
      _
    %377 = vsyncpa [#allocation3], 1
    %378 = vsyncpa [#allocation6], 1
    %379 = vsyncpa [#allocation9], 1
    %380 = vsyncpa [#allocation4], 1

</llo_original>
